<compile_context>
chip_gen: v6e
topology: v6e:2x2x1
jax: 0.10.0
libtpu: 0.0.40
codegen_flags: <defaults>
</compile_context>

<pallas_src>
import functools

import jax
import jax.numpy as jnp
from jax import lax
from jax.experimental import pallas as pl
from jax.experimental.pallas import tpu as pltpu


# ---------------------------------------------------------------------------
# In-kernel replication-padded moving average (shared by both layouts).
# ---------------------------------------------------------------------------
def _window_mean_2d(x, *, kernel_size, pad, time_axis):
    """Moving average of odd width `kernel_size` along `time_axis` of a 2-D
    f32 array, with edge replication (matches AvgPool1d on a replicate-padded
    series)."""
    L = x.shape[time_axis]
    if time_axis == 0:
        first = x[0:1, :]
        last = x[L - 1:L, :]
    else:
        first = x[:, 0:1]
        last = x[:, L - 1:L]

    # Hoisted once: time index per element and full-tile edge broadcasts
    # (JAX does not CSE broadcast_in_dim, so do not re-create them per d).
    t_idx = lax.broadcasted_iota(jnp.int32, x.shape, time_axis)
    first_b = jnp.broadcast_to(first, x.shape)
    last_b = jnp.broadcast_to(last, x.shape)

    acc = x  # d = 0 (centre) term
    for d in range(1, pad + 1):
        if d >= L:
            # The whole shifted term falls on the replicated edges.
            acc = acc + first_b + last_b
            continue
        # fwd[t] = x[min(t + d, L - 1)]   (roll by L-d == roll by -d, kept
        # non-negative so the rotate amount is always valid)
        fwd = jnp.where(t_idx < L - d,
                        pltpu.roll(x, L - d, axis=time_axis), last_b)
        # bwd[t] = x[max(t - d, 0)]
        bwd = jnp.where(t_idx >= d,
                        pltpu.roll(x, d, axis=time_axis), first_b)
        acc = acc + fwd + bwd
    return acc * (1.0 / kernel_size)


def _decomp_rows_kernel(x_ref, res_ref, mean_ref, *, kernel_size, pad):
    # x_ref: (R_TILE, L) -- rows are (batch, channel) pairs, time on lanes.
    x = x_ref[...].astype(jnp.float32)
    mean = _window_mean_2d(x, kernel_size=kernel_size, pad=pad, time_axis=1)
    res_ref[...] = (x - mean).astype(res_ref.dtype)
    mean_ref[...] = mean.astype(mean_ref.dtype)


def _decomp_native_kernel(x_ref, res_ref, mean_ref, *, kernel_size, pad):
    # x_ref: (1, L, C_TILE) -- time on sublanes, channels dense on lanes.
    x = x_ref[0].astype(jnp.float32)            # (L, C_TILE)
    mean = _window_mean_2d(x, kernel_size=kernel_size, pad=pad, time_axis=0)
    res_ref[0] = (x - mean).astype(res_ref.dtype)
    mean_ref[0] = mean.astype(mean_ref.dtype)


# ---------------------------------------------------------------------------
# Wrapper: layout + tiling decisions.
# ---------------------------------------------------------------------------
def _round_up(a, b):
    return ((a + b - 1) // b) * b


def _vmem_budget():
    """Returns (vmem_limit_bytes, target_input_block_bytes) for this chip."""
    try:
        cap = getattr(pltpu.get_tpu_info(), "vmem_capacity_bytes", None)
    except Exception:
        cap = None
    if cap is None:
        cap = 64 << 20                     # conservative: v7x has 64 MiB / TC
    vmem_limit = min(64 << 20, int(0.70 * cap))
    # 128-MiB parts (v5e/v6e): ~3 MiB input blocks amortise per-step overhead.
    # 64-MiB parts (v7x): ~1.5 MiB keeps in + 2 out double-buffers plus the
    # f32 temporaries well inside the smaller budget.
    target_in = (3 << 20) if cap >= (96 << 20) else (3 << 19)
    return vmem_limit, target_in


def series_decomp(x, kernel_size):
    """x: (B, L, C) -> (res, moving_mean), both (B, L, C)."""
    assert kernel_size >= 1 and kernel_size % 2 == 1, (
        "kernel_size must be odd (the PyTorch module only preserves length "
        "for odd kernel sizes)")
    B, L, C = x.shape
    pad = (kernel_size - 1) // 2
    itemsize = jnp.dtype(x.dtype).itemsize

    vmem_limit, target_in_bytes = _vmem_budget()
    # Live footprint per block element: input + 2 outputs (double-buffered)
    # plus ~7 full-tile f32 temporaries inside the body.
    fp_per_elem = 6 * itemsize + 28
    max_block_elems = max(1, int(0.7 * vmem_limit) // fp_per_elem)
    tgt_block_elems = min(max_block_elems, max(1, target_in_bytes // itemsize))

    def cparams(sem):
        return pltpu.CompilerParams(dimension_semantics=sem,
                                    vmem_limit_bytes=vmem_limit)

    if C >= 128:
        # -------- native-layout fast path: no wrapper transposes ----------
        n_groups = max(1, C // 128)              # 128-lane channel groups
        g_per_block = max(1, min(n_groups, tgt_block_elems // max(1, L * 128)))
        # Keep >= 2 grid steps so the grid can shard across v7x's 2 cores.
        if B * pl.cdiv(C, g_per_block * 128) < 2 and n_groups >= 2:
            g_per_block = max(1, n_groups // 2)
        c_tile = g_per_block * 128
        grid = (B, pl.cdiv(C, c_tile))

        kernel = functools.partial(
            _decomp_native_kernel, kernel_size=kernel_size, pad=pad)
        res, mean = pl.pallas_call(
            kernel,
            out_shape=(jax.ShapeDtypeStruct((B, L, C), x.dtype),
                       jax.ShapeDtypeStruct((B, L, C), x.dtype)),
            grid_spec=pltpu.PrefetchScalarGridSpec(
                num_scalar_prefetch=0,
                grid=grid,
                in_specs=[pl.BlockSpec((1, L, c_tile), lambda b, c: (b, 0, c))],
                out_specs=[pl.BlockSpec((1, L, c_tile), lambda b, c: (b, 0, c)),
                           pl.BlockSpec((1, L, c_tile), lambda b, c: (b, 0, c))],
            ),
            compiler_params=cparams(("parallel", "parallel")),
        )(x)
        return res, mean

    # -------- lane-dense path for small C: time on lanes ------------------
    # Small channel counts (7/8/21/...) would leave >90% of every store
    # masked in the native layout, so flip to a (B*C, L) view instead; the
    # transpose/reshape is XLA-side plumbing, only used when C < 128.
    xt = jnp.transpose(x, (0, 2, 1)).reshape(B * C, L)
    R = B * C
    row_align = {4: 8, 2: 16, 1: 32}.get(itemsize, 8)   # packed-sublane aware
    r_tile = max(row_align,
                 (tgt_block_elems // max(1, L)) // row_align * row_align)
    r_tile = min(r_tile, _round_up(R, row_align))
    if pl.cdiv(R, r_tile) < 2 and R > row_align:
        # >= 2 grid steps so both v7x TensorCores get work.
        r_tile = _round_up(pl.cdiv(R, 2), row_align)
    grid = (pl.cdiv(R, r_tile),)

    kernel = functools.partial(
        _decomp_rows_kernel, kernel_size=kernel_size, pad=pad)
    res_f, mean_f = pl.pallas_call(
        kernel,
        out_shape=(jax.ShapeDtypeStruct((R, L), x.dtype),
                   jax.ShapeDtypeStruct((R, L), x.dtype)),
        grid_spec=pltpu.PrefetchScalarGridSpec(
            num_scalar_prefetch=0,
            grid=grid,
            in_specs=[pl.BlockSpec((r_tile, L), lambda i: (i, 0))],
            out_specs=[pl.BlockSpec((r_tile, L), lambda i: (i, 0)),
                       pl.BlockSpec((r_tile, L), lambda i: (i, 0))],
        ),
        compiler_params=cparams(("parallel",)),
    )(xt)
    res = jnp.transpose(res_f.reshape(B, C, L), (0, 2, 1))
    mean = jnp.transpose(mean_f.reshape(B, C, L), (0, 2, 1))
    return res, mean


# ---------------------------------------------------------------------------
# Pure-JAX reference mirroring the PyTorch module.
# ---------------------------------------------------------------------------
def _reference(x, kernel_size):
    pad = (kernel_size - 1) // 2
    front = jnp.repeat(x[:, 0:1, :], pad, axis=1)
    end = jnp.repeat(x[:, -1:, :], pad, axis=1)
    xp = jnp.concatenate([front, x, end], axis=1)
    L = x.shape[1]
    windows = jnp.stack([xp[:, k:k + L, :] for k in range(kernel_size)], axis=0)
    mean = jnp.mean(windows, axis=0)
    return x - mean, mean


if __name__ == "__main__":
    key = jax.random.PRNGKey(0)
    kernel_size = 25   # Autoformer's default moving-average window

    cases = [
        (2, 128, 8),    # small-C raw series   -> lane-dense (transposed) path
        (2, 96, 128),   # d_model-sized input  -> native (B, L, C) fast path
    ]
    for i, (B, L, C) in enumerate(cases):
        k = jax.random.fold_in(key, i)
        x = jax.random.normal(k, (B, L, C), dtype=jnp.float32)

        res, mean = series_decomp(x, kernel_size)
        res = jax.block_until_ready(res)
        mean = jax.block_until_ready(mean)

        res_ref, mean_ref = _reference(x, kernel_size)
        assert jnp.allclose(mean, mean_ref, atol=1e-5, rtol=1e-5), (B, L, C)
        assert jnp.allclose(res, res_ref, atol=1e-5, rtol=1e-5), (B, L, C)

    print("KERNEL_OK")
</pallas_src>

<mosaic_0001>
module attributes {stable_mosaic.version = 11 : i64} {
  func.func @_decomp_rows_kernel(%arg0: i32, %arg1: memref<8x128xf32, #tpu.memory_space<vmem>>, %arg2: memref<8x128xf32, #tpu.memory_space<vmem>>, %arg3: memref<8x128xf32, #tpu.memory_space<vmem>>) attributes {dimension_semantics = [#tpu.dimension_semantics<parallel>], iteration_bounds = array<i64: 2>, scalar_prefetch = 0 : i64, scratch_operands = 0 : i64, tpu.core_type = #tpu.core_type<tc>, window_params = [{transform_indices = @transform_0, window_bounds = array<i64: 8, 128>}, {transform_indices = @transform_1, window_bounds = array<i64: 8, 128>}, {transform_indices = @transform_2, window_bounds = array<i64: 8, 128>}]} {
    %c0 = arith.constant 0 : index
    %c0_0 = arith.constant 0 : index
    %0 = vector.load %arg1[%c0, %c0_0] : memref<8x128xf32, #tpu.memory_space<vmem>>, vector<8x128xf32>
    %1 = vector.extract_strided_slice %0 {offsets = [0, 0], sizes = [8, 1], strides = [1, 1]} : vector<8x128xf32> to vector<8x1xf32>
    %2 = vector.extract_strided_slice %0 {offsets = [0, 127], sizes = [8, 1], strides = [1, 1]} : vector<8x128xf32> to vector<8x1xf32>
    %3 = tpu.iota {dimensions = array<i32: 1>} : vector<8x128xi32>
    %4 = vector.shape_cast %1 : vector<8x1xf32> to vector<8x1xf32>
    %5 = vector.broadcast %4 : vector<8x1xf32> to vector<8x128xf32>
    %6 = vector.shape_cast %2 : vector<8x1xf32> to vector<8x1xf32>
    %7 = vector.broadcast %6 : vector<8x1xf32> to vector<8x128xf32>
    %c127_i32 = arith.constant 127 : i32
    %8 = vector.broadcast %c127_i32 : i32 to vector<8x128xi32>
    %9 = arith.cmpi slt, %3, %8 : vector<8x128xi32>
    %c127_i32_1 = arith.constant 127 : i32
    %10 = tpu.dynamic_rotate %0 by %c127_i32_1 dim 1 : vector<8x128xf32>, i32 -> vector<8x128xf32>
    %11 = arith.select %9, %10, %7 : vector<8x128xi1>, vector<8x128xf32>
    %c1_i32 = arith.constant 1 : i32
    %12 = vector.broadcast %c1_i32 : i32 to vector<8x128xi32>
    %13 = arith.cmpi sge, %3, %12 : vector<8x128xi32>
    %c1_i32_2 = arith.constant 1 : i32
    %14 = tpu.dynamic_rotate %0 by %c1_i32_2 dim 1 : vector<8x128xf32>, i32 -> vector<8x128xf32>
    %15 = arith.select %13, %14, %5 : vector<8x128xi1>, vector<8x128xf32>
    %16 = arith.addf %0, %11 : vector<8x128xf32>
    %17 = arith.addf %16, %15 : vector<8x128xf32>
    %c126_i32 = arith.constant 126 : i32
    %18 = vector.broadcast %c126_i32 : i32 to vector<8x128xi32>
    %19 = arith.cmpi slt, %3, %18 : vector<8x128xi32>
    %c126_i32_3 = arith.constant 126 : i32
    %20 = tpu.dynamic_rotate %0 by %c126_i32_3 dim 1 : vector<8x128xf32>, i32 -> vector<8x128xf32>
    %21 = arith.select %19, %20, %7 : vector<8x128xi1>, vector<8x128xf32>
    %c2_i32 = arith.constant 2 : i32
    %22 = vector.broadcast %c2_i32 : i32 to vector<8x128xi32>
    %23 = arith.cmpi sge, %3, %22 : vector<8x128xi32>
    %c2_i32_4 = arith.constant 2 : i32
    %24 = tpu.dynamic_rotate %0 by %c2_i32_4 dim 1 : vector<8x128xf32>, i32 -> vector<8x128xf32>
    %25 = arith.select %23, %24, %5 : vector<8x128xi1>, vector<8x128xf32>
    %26 = arith.addf %17, %21 : vector<8x128xf32>
    %27 = arith.addf %26, %25 : vector<8x128xf32>
    %c125_i32 = arith.constant 125 : i32
    %28 = vector.broadcast %c125_i32 : i32 to vector<8x128xi32>
    %29 = arith.cmpi slt, %3, %28 : vector<8x128xi32>
    %c125_i32_5 = arith.constant 125 : i32
    %30 = tpu.dynamic_rotate %0 by %c125_i32_5 dim 1 : vector<8x128xf32>, i32 -> vector<8x128xf32>
    %31 = arith.select %29, %30, %7 : vector<8x128xi1>, vector<8x128xf32>
    %c3_i32 = arith.constant 3 : i32
    %32 = vector.broadcast %c3_i32 : i32 to vector<8x128xi32>
    %33 = arith.cmpi sge, %3, %32 : vector<8x128xi32>
    %c3_i32_6 = arith.constant 3 : i32
    %34 = tpu.dynamic_rotate %0 by %c3_i32_6 dim 1 : vector<8x128xf32>, i32 -> vector<8x128xf32>
    %35 = arith.select %33, %34, %5 : vector<8x128xi1>, vector<8x128xf32>
    %36 = arith.addf %27, %31 : vector<8x128xf32>
    %37 = arith.addf %36, %35 : vector<8x128xf32>
    %c124_i32 = arith.constant 124 : i32
    %38 = vector.broadcast %c124_i32 : i32 to vector<8x128xi32>
    %39 = arith.cmpi slt, %3, %38 : vector<8x128xi32>
    %c124_i32_7 = arith.constant 124 : i32
    %40 = tpu.dynamic_rotate %0 by %c124_i32_7 dim 1 : vector<8x128xf32>, i32 -> vector<8x128xf32>
    %41 = arith.select %39, %40, %7 : vector<8x128xi1>, vector<8x128xf32>
    %c4_i32 = arith.constant 4 : i32
    %42 = vector.broadcast %c4_i32 : i32 to vector<8x128xi32>
    %43 = arith.cmpi sge, %3, %42 : vector<8x128xi32>
    %c4_i32_8 = arith.constant 4 : i32
    %44 = tpu.dynamic_rotate %0 by %c4_i32_8 dim 1 : vector<8x128xf32>, i32 -> vector<8x128xf32>
    %45 = arith.select %43, %44, %5 : vector<8x128xi1>, vector<8x128xf32>
    %46 = arith.addf %37, %41 : vector<8x128xf32>
    %47 = arith.addf %46, %45 : vector<8x128xf32>
    %c123_i32 = arith.constant 123 : i32
    %48 = vector.broadcast %c123_i32 : i32 to vector<8x128xi32>
    %49 = arith.cmpi slt, %3, %48 : vector<8x128xi32>
    %c123_i32_9 = arith.constant 123 : i32
    %50 = tpu.dynamic_rotate %0 by %c123_i32_9 dim 1 : vector<8x128xf32>, i32 -> vector<8x128xf32>
    %51 = arith.select %49, %50, %7 : vector<8x128xi1>, vector<8x128xf32>
    %c5_i32 = arith.constant 5 : i32
    %52 = vector.broadcast %c5_i32 : i32 to vector<8x128xi32>
    %53 = arith.cmpi sge, %3, %52 : vector<8x128xi32>
    %c5_i32_10 = arith.constant 5 : i32
    %54 = tpu.dynamic_rotate %0 by %c5_i32_10 dim 1 : vector<8x128xf32>, i32 -> vector<8x128xf32>
    %55 = arith.select %53, %54, %5 : vector<8x128xi1>, vector<8x128xf32>
    %56 = arith.addf %47, %51 : vector<8x128xf32>
    %57 = arith.addf %56, %55 : vector<8x128xf32>
    %c122_i32 = arith.constant 122 : i32
    %58 = vector.broadcast %c122_i32 : i32 to vector<8x128xi32>
    %59 = arith.cmpi slt, %3, %58 : vector<8x128xi32>
    %c122_i32_11 = arith.constant 122 : i32
    %60 = tpu.dynamic_rotate %0 by %c122_i32_11 dim 1 : vector<8x128xf32>, i32 -> vector<8x128xf32>
    %61 = arith.select %59, %60, %7 : vector<8x128xi1>, vector<8x128xf32>
    %c6_i32 = arith.constant 6 : i32
    %62 = vector.broadcast %c6_i32 : i32 to vector<8x128xi32>
    %63 = arith.cmpi sge, %3, %62 : vector<8x128xi32>
    %c6_i32_12 = arith.constant 6 : i32
    %64 = tpu.dynamic_rotate %0 by %c6_i32_12 dim 1 : vector<8x128xf32>, i32 -> vector<8x128xf32>
    %65 = arith.select %63, %64, %5 : vector<8x128xi1>, vector<8x128xf32>
    %66 = arith.addf %57, %61 : vector<8x128xf32>
    %67 = arith.addf %66, %65 : vector<8x128xf32>
    %c121_i32 = arith.constant 121 : i32
    %68 = vector.broadcast %c121_i32 : i32 to vector<8x128xi32>
    %69 = arith.cmpi slt, %3, %68 : vector<8x128xi32>
    %c121_i32_13 = arith.constant 121 : i32
    %70 = tpu.dynamic_rotate %0 by %c121_i32_13 dim 1 : vector<8x128xf32>, i32 -> vector<8x128xf32>
    %71 = arith.select %69, %70, %7 : vector<8x128xi1>, vector<8x128xf32>
    %c7_i32 = arith.constant 7 : i32
    %72 = vector.broadcast %c7_i32 : i32 to vector<8x128xi32>
    %73 = arith.cmpi sge, %3, %72 : vector<8x128xi32>
    %c7_i32_14 = arith.constant 7 : i32
    %74 = tpu.dynamic_rotate %0 by %c7_i32_14 dim 1 : vector<8x128xf32>, i32 -> vector<8x128xf32>
    %75 = arith.select %73, %74, %5 : vector<8x128xi1>, vector<8x128xf32>
    %76 = arith.addf %67, %71 : vector<8x128xf32>
    %77 = arith.addf %76, %75 : vector<8x128xf32>
    %c120_i32 = arith.constant 120 : i32
    %78 = vector.broadcast %c120_i32 : i32 to vector<8x128xi32>
    %79 = arith.cmpi slt, %3, %78 : vector<8x128xi32>
    %c120_i32_15 = arith.constant 120 : i32
    %80 = tpu.dynamic_rotate %0 by %c120_i32_15 dim 1 : vector<8x128xf32>, i32 -> vector<8x128xf32>
    %81 = arith.select %79, %80, %7 : vector<8x128xi1>, vector<8x128xf32>
    %c8_i32 = arith.constant 8 : i32
    %82 = vector.broadcast %c8_i32 : i32 to vector<8x128xi32>
    %83 = arith.cmpi sge, %3, %82 : vector<8x128xi32>
    %c8_i32_16 = arith.constant 8 : i32
    %84 = tpu.dynamic_rotate %0 by %c8_i32_16 dim 1 : vector<8x128xf32>, i32 -> vector<8x128xf32>
    %85 = arith.select %83, %84, %5 : vector<8x128xi1>, vector<8x128xf32>
    %86 = arith.addf %77, %81 : vector<8x128xf32>
    %87 = arith.addf %86, %85 : vector<8x128xf32>
    %c119_i32 = arith.constant 119 : i32
    %88 = vector.broadcast %c119_i32 : i32 to vector<8x128xi32>
    %89 = arith.cmpi slt, %3, %88 : vector<8x128xi32>
    %c119_i32_17 = arith.constant 119 : i32
    %90 = tpu.dynamic_rotate %0 by %c119_i32_17 dim 1 : vector<8x128xf32>, i32 -> vector<8x128xf32>
    %91 = arith.select %89, %90, %7 : vector<8x128xi1>, vector<8x128xf32>
    %c9_i32 = arith.constant 9 : i32
    %92 = vector.broadcast %c9_i32 : i32 to vector<8x128xi32>
    %93 = arith.cmpi sge, %3, %92 : vector<8x128xi32>
    %c9_i32_18 = arith.constant 9 : i32
    %94 = tpu.dynamic_rotate %0 by %c9_i32_18 dim 1 : vector<8x128xf32>, i32 -> vector<8x128xf32>
    %95 = arith.select %93, %94, %5 : vector<8x128xi1>, vector<8x128xf32>
    %96 = arith.addf %87, %91 : vector<8x128xf32>
    %97 = arith.addf %96, %95 : vector<8x128xf32>
    %c118_i32 = arith.constant 118 : i32
    %98 = vector.broadcast %c118_i32 : i32 to vector<8x128xi32>
    %99 = arith.cmpi slt, %3, %98 : vector<8x128xi32>
    %c118_i32_19 = arith.constant 118 : i32
    %100 = tpu.dynamic_rotate %0 by %c118_i32_19 dim 1 : vector<8x128xf32>, i32 -> vector<8x128xf32>
    %101 = arith.select %99, %100, %7 : vector<8x128xi1>, vector<8x128xf32>
    %c10_i32 = arith.constant 10 : i32
    %102 = vector.broadcast %c10_i32 : i32 to vector<8x128xi32>
    %103 = arith.cmpi sge, %3, %102 : vector<8x128xi32>
    %c10_i32_20 = arith.constant 10 : i32
    %104 = tpu.dynamic_rotate %0 by %c10_i32_20 dim 1 : vector<8x128xf32>, i32 -> vector<8x128xf32>
    %105 = arith.select %103, %104, %5 : vector<8x128xi1>, vector<8x128xf32>
    %106 = arith.addf %97, %101 : vector<8x128xf32>
    %107 = arith.addf %106, %105 : vector<8x128xf32>
    %c117_i32 = arith.constant 117 : i32
    %108 = vector.broadcast %c117_i32 : i32 to vector<8x128xi32>
    %109 = arith.cmpi slt, %3, %108 : vector<8x128xi32>
    %c117_i32_21 = arith.constant 117 : i32
    %110 = tpu.dynamic_rotate %0 by %c117_i32_21 dim 1 : vector<8x128xf32>, i32 -> vector<8x128xf32>
    %111 = arith.select %109, %110, %7 : vector<8x128xi1>, vector<8x128xf32>
    %c11_i32 = arith.constant 11 : i32
    %112 = vector.broadcast %c11_i32 : i32 to vector<8x128xi32>
    %113 = arith.cmpi sge, %3, %112 : vector<8x128xi32>
    %c11_i32_22 = arith.constant 11 : i32
    %114 = tpu.dynamic_rotate %0 by %c11_i32_22 dim 1 : vector<8x128xf32>, i32 -> vector<8x128xf32>
    %115 = arith.select %113, %114, %5 : vector<8x128xi1>, vector<8x128xf32>
    %116 = arith.addf %107, %111 : vector<8x128xf32>
    %117 = arith.addf %116, %115 : vector<8x128xf32>
    %c116_i32 = arith.constant 116 : i32
    %118 = vector.broadcast %c116_i32 : i32 to vector<8x128xi32>
    %119 = arith.cmpi slt, %3, %118 : vector<8x128xi32>
    %c116_i32_23 = arith.constant 116 : i32
    %120 = tpu.dynamic_rotate %0 by %c116_i32_23 dim 1 : vector<8x128xf32>, i32 -> vector<8x128xf32>
    %121 = arith.select %119, %120, %7 : vector<8x128xi1>, vector<8x128xf32>
    %c12_i32 = arith.constant 12 : i32
    %122 = vector.broadcast %c12_i32 : i32 to vector<8x128xi32>
    %123 = arith.cmpi sge, %3, %122 : vector<8x128xi32>
    %c12_i32_24 = arith.constant 12 : i32
    %124 = tpu.dynamic_rotate %0 by %c12_i32_24 dim 1 : vector<8x128xf32>, i32 -> vector<8x128xf32>
    %125 = arith.select %123, %124, %5 : vector<8x128xi1>, vector<8x128xf32>
    %126 = arith.addf %117, %121 : vector<8x128xf32>
    %127 = arith.addf %126, %125 : vector<8x128xf32>
    %cst = arith.constant 4.000000e-02 : f32
    %128 = vector.broadcast %cst : f32 to vector<8x128xf32>
    %129 = arith.mulf %127, %128 : vector<8x128xf32>
    %130 = arith.subf %0, %129 : vector<8x128xf32>
    %c0_25 = arith.constant 0 : index
    %c0_26 = arith.constant 0 : index
    %131 = vector.load %arg2[%c0_25, %c0_26] : memref<8x128xf32, #tpu.memory_space<vmem>>, vector<8x128xf32>
    tpu.vector_store %arg2[%c0_25, %c0_26], %130 {strides = array<i32>} : memref<8x128xf32, #tpu.memory_space<vmem>>, vector<8x128xf32>,
    %c0_27 = arith.constant 0 : index
    %c0_28 = arith.constant 0 : index
    %132 = vector.load %arg3[%c0_27, %c0_28] : memref<8x128xf32, #tpu.memory_space<vmem>>, vector<8x128xf32>
    tpu.vector_store %arg3[%c0_27, %c0_28], %129 {strides = array<i32>} : memref<8x128xf32, #tpu.memory_space<vmem>>, vector<8x128xf32>,
    return
  }
  func.func @transform_0(%arg0: i32) -> (i32, i32) {
    %c0_i32 = arith.constant 0 : i32
    %c0_i32_0 = arith.constant 0 : i32
    return %arg0, %c0_i32 : i32, i32
  }
  func.func @transform_1(%arg0: i32) -> (i32, i32) {
    %c0_i32 = arith.constant 0 : i32
    %c0_i32_0 = arith.constant 0 : i32
    return %arg0, %c0_i32 : i32, i32
  }
  func.func @transform_2(%arg0: i32) -> (i32, i32) {
    %c0_i32 = arith.constant 0 : i32
    %c0_i32_0 = arith.constant 0 : i32
    return %arg0, %c0_i32 : i32, i32
  }
}

</mosaic_0001>

<llo_original>
// kernel: tpu_custom_call.1
$region0: #{tpu_custom_call.1}
  #allocation0 [shape = 'u32[]', space=smem, size = 0x4, offset = 0x4, fixed_abs, tag = 'smem constant byte address 0x4 - core index']
  #allocation1 [shape = 'u32[144,128]{1,0:T(1,128)}', space=vmem, size = 0x12000, scoped, tag = 'internal scratch']
  %s0 = inlined_call_operand.hbm [shape: f32[16,128], index: 0, kind: input, shape index: {}]
  %s1 = inlined_call_operand.hbm [shape: f32[16,128], index: 1, kind: output, shape index: {0}]
  %s2 = inlined_call_operand.hbm [shape: f32[16,128], index: 2, kind: output, shape index: {1}]
  %3 = xla_tuple %s1, %s2
  %s4 = sld [smem:[#allocation0]]
  $region49: #{tpu_custom_call.1} parent=0
    _
  %s6 = ssub.s32 1, %s4
  %s7 = scalar_select 0, %s6, %s4
  $region1: #{tpu_custom_call.1} parent=0
    #allocation2 [shape = 'u8[8192]{0}', space=vmem, size = 0x2000, scoped, tag = 'input window, operand 0']
    #allocation3 [shape = 's32[2]{0}', space=sflag, size = 0x8, scoped, tag = 'scoped memory for tpu_custom_call.1']
    #allocation4 [shape = 's32[2]{0}', space=sflag, size = 0x8, scoped, tag = 'scoped memory for tpu_custom_call.1']
    #allocation5 [shape = 'u8[8192]{0}', space=vmem, size = 0x2000, scoped, tag = 'output window, operand 0']
    #allocation6 [shape = 'u8[8192]{0}', space=vmem, size = 0x2000, scoped, tag = 'output window, operand 1']
    #allocation7 [shape = 's32[2]{0}', space=sflag, size = 0x8, scoped, tag = 'scoped memory for tpu_custom_call.1']
    %8 = vsyncpa [#allocation3], 0
    %s9 = scalar_lea.sflag [#allocation3], 1
    %10 = vsyncpa %s9, 0
    %11 = vsyncpa [#allocation4], 0
    %s12 = scalar_lea.sflag [#allocation4], 1
    %13 = vsyncpa %s12, 0
    %14 = vsyncpa [#allocation7], 0
    %s15 = scalar_lea.sflag [#allocation7], 1
    %16 = vsyncpa %s15, 0
    loop: start=0, step=1, limit=4
    $region2: #{tpu_custom_call.1} parent=1 // loop_pre_header
      _
    $region3: #{tpu_custom_call.1} parent=1 // loop_header
      %s18 = sphi 0, %s22
      %p19 = scmp.ge.s32.totalorder %s18, 4
      %s28 = sphi 0, %s30
      %s31 = sphi 0, %s28
      %s32 = sphi 0, %s31
      %s48 = sphi 0, %s32
      %s54 = sphi 0, %s56
      %s57 = sphi 0, %s54
      %s58 = sphi 0, %s57
      %s74 = sphi 0, %s58
      %s80 = sphi 0, %s82
      %s83 = sphi 0, %s80
      %s84 = sphi 0, %s83
      %s100 = sphi 0, %s84
    $region4: #{tpu_custom_call.1} parent=1 // loop_header_branch
      %21 = sbr.rel (%p19) target = $region8
    $region5: #{tpu_custom_call.1} parent=1 // loop_body
      %s23 = ssub.s32 %s18, 1
      %s24 = ssub.s32 %s18, 2
      %s25 = sadd.s32 %s18, 1
      %s26 = ssub.s32 %s18, %s25
      %p27 = scmp.eq.s32.totalorder %s26, 0
      %s29 = sadd.s32 %s28, 1
      %s30 = scalar_select %p27, %s28, %s29
      %p33 = pneg %p27
      %p34 = scmp.eq.s32.totalorder %s18, 1
      %p35 = por %p33, %p34
      %p36 = scmp.ne.s32.totalorder %s28, %s31
      %p37 = scmp.eq.s32.totalorder %s18, 0
      %p38 = por %p36, %p37
      %p39 = scmp.ne.s32.totalorder %s28, %s31
      %p40 = scmp.eq.s32.totalorder %s23, 1
      %p41 = por %p39, %p40
      %p42 = scmp.ne.s32.totalorder %s31, %s32
      %p43 = scmp.eq.s32.totalorder %s23, 0
      %p44 = por %p42, %p43
      %p45 = scmp.ne.s32.totalorder %s31, %s32
      %p46 = scmp.eq.s32.totalorder %s24, 1
      %p47 = por %p45, %p46
      %p49 = scmp.ne.s32.totalorder %s32, %s48
      %p50 = scmp.eq.s32.totalorder %s24, 0
      %p51 = por %p49, %p50
      %s52 = ssub.s32 %s18, %s25
      %p53 = scmp.eq.s32.totalorder %s52, 0
      %s55 = sadd.s32 %s54, 1
      %s56 = scalar_select %p53, %s54, %s55
      %p59 = pneg %p53
      %p60 = scmp.eq.s32.totalorder %s18, 1
      %p61 = por %p59, %p60
      %p62 = scmp.ne.s32.totalorder %s54, %s57
      %p63 = scmp.eq.s32.totalorder %s18, 0
      %p64 = por %p62, %p63
      %p65 = scmp.ne.s32.totalorder %s54, %s57
      %p66 = scmp.eq.s32.totalorder %s23, 1
      %p67 = por %p65, %p66
      %p68 = scmp.ne.s32.totalorder %s57, %s58
      %p69 = scmp.eq.s32.totalorder %s23, 0
      %p70 = por %p68, %p69
      %p71 = scmp.ne.s32.totalorder %s57, %s58
      %p72 = scmp.eq.s32.totalorder %s24, 1
      %p73 = por %p71, %p72
      %p75 = scmp.ne.s32.totalorder %s58, %s74
      %p76 = scmp.eq.s32.totalorder %s24, 0
      %p77 = por %p75, %p76
      %s78 = ssub.s32 %s18, %s25
      %p79 = scmp.eq.s32.totalorder %s78, 0
      %s81 = sadd.s32 %s80, 1
      %s82 = scalar_select %p79, %s80, %s81
      %p85 = pneg %p79
      %p86 = scmp.eq.s32.totalorder %s18, 1
      %p87 = por %p85, %p86
      %p88 = scmp.ne.s32.totalorder %s80, %s83
      %p89 = scmp.eq.s32.totalorder %s18, 0
      %p90 = por %p88, %p89
      %p91 = scmp.ne.s32.totalorder %s80, %s83
      %p92 = scmp.eq.s32.totalorder %s23, 1
      %p93 = por %p91, %p92
      %p94 = scmp.ne.s32.totalorder %s83, %s84
      %p95 = scmp.eq.s32.totalorder %s23, 0
      %p96 = por %p94, %p95
      %p97 = scmp.ne.s32.totalorder %s83, %s84
      %p98 = scmp.eq.s32.totalorder %s24, 1
      %p99 = por %p97, %p98
      %p101 = scmp.ne.s32.totalorder %s84, %s100
      %p102 = scmp.eq.s32.totalorder %s24, 0
      %p103 = por %p101, %p102
      %p104 = scmp.le.s32.totalorder 1, %s18
      %p105 = scmp.lt.s32.totalorder %s18, 3
      %p106 = pnand %p104, %p105
      %p107 = pneg %p106
      // Predicated region
      $region9: #{tpu_custom_call.1} parent=5 // pred_check
        _
      $region10: #{tpu_custom_call.1} parent=5 // pred_check_branch
        %109 = sbr.rel (%p106) target = $region12
      $region11: #{tpu_custom_call.1} parent=5 // pred_region
        %s110 = ssub.s32 %s18, 1
      $region12: #{tpu_custom_call.1} parent=5 // pred_fallthru
        _
      %p111 = scmp.lt.s32.totalorder %s18, 2
      // Predicated region
      $region13: #{tpu_custom_call.1} parent=5 // pred_check
        %p112 = pneg %p111
      $region14: #{tpu_custom_call.1} parent=5 // pred_check_branch
        %114 = sbr.rel (%p112) target = $region16
      $region15: #{tpu_custom_call.1} parent=5 // pred_region
        // Predicated region
        $region17: #{tpu_custom_call.1} parent=15 // pred_check
          %p115 = pneg %p38
        $region18: #{tpu_custom_call.1} parent=15 // pred_check_branch
          %117 = sbr.rel (%p115) target = $region20
        $region19: #{tpu_custom_call.1} parent=15 // pred_region
          %s118 = sand.u32 %s28, 1
          %s119 = scalar_lea.sflag [#allocation3], %s118
          %s120 = sand.u32 %s28, 1
          %s121 = smul.addr %s120, 8
          %s122 = scalar_lea.vmem [#allocation2], %s121
          %s124 = ssub.s32 128, 128
          %125 = vsyncadd %s119, %s124
          %s126 = smul.addr %s18, 128
          %s127 = scalar_lea.hbm %s0, %s126
          %s129 = sshll.u32 %s122, 4
          %s130 = int_to_ptr.vmem [resolvable:$true] %s129
          %132 = dma.hbm_to_vmem [thread:$0]  %s127, 128, %s130, %s119
        $region20: #{tpu_custom_call.1} parent=15 // pred_fallthru
          _
      $region16: #{tpu_custom_call.1} parent=5 // pred_fallthru
        _
      %p133 = scmp.le.s32.totalorder 1, %s18
      %p134 = scmp.lt.s32.totalorder %s18, 3
      %p135 = pnand %p133, %p134
      %p136 = pneg %p135
      // Predicated region
      $region21: #{tpu_custom_call.1} parent=5 // pred_check
        _
      $region22: #{tpu_custom_call.1} parent=5 // pred_check_branch
        %138 = sbr.rel (%p135) target = $region24
      $region23: #{tpu_custom_call.1} parent=5 // pred_region
        %s139 = ssub.s32 %s18, 1
        %s140 = sand.u32 %s31, 1
        %s141 = scalar_lea.sflag [#allocation3], %s140
        %s142 = sand.u32 %s31, 1
        %s143 = smul.addr %s142, 8
        %s144 = scalar_lea.vmem [#allocation2], %s143
        // Predicated region
        $region25: #{tpu_custom_call.1} parent=23 // pred_check
          %p145 = pneg %p44
        $region26: #{tpu_custom_call.1} parent=23 // pred_check_branch
          %147 = sbr.rel (%p145) target = $region28
        $region27: #{tpu_custom_call.1} parent=23 // pred_region
          %148 = dma.done %s141, 128
        $region28: #{tpu_custom_call.1} parent=23 // pred_fallthru
          _
        %s149 = sand.u32 %s31, 1
        %s150 = scalar_lea.sflag [#allocation3], %s149
        %s151 = sand.u32 %s31, 1
        %s152 = smul.addr %s151, 8
        %s153 = scalar_lea.vmem [#allocation2], %s152
        %p154 = pneg %p44
        %p155 = pneg %p41
        %p156 = pneg %p70
        %p157 = pneg %p67
        %s158 = sand.u32 %s57, 1
        %s159 = scalar_lea.sflag [#allocation4], %s158
        %s160 = sand.u32 %s57, 1
        %s161 = smul.addr %s160, 8
        %s162 = scalar_lea.vmem [#allocation5], %s161
        %p163 = pneg %p96
        %p164 = pneg %p93
        %s165 = sand.u32 %s83, 1
        %s166 = scalar_lea.sflag [#allocation7], %s165
        %s167 = sand.u32 %s83, 1
        %s168 = smul.addr %s167, 8
        %s169 = scalar_lea.vmem [#allocation6], %s168
        %v170 = vld [vmem:[%s144] sm:$0xff]
        %v171 = vlaneseq
        %v172 = vand.u32 %v171, 127
        %174 = vset.pattern.permute.xlu0 0
        %175 = vperm.xlu0 %174, %v170
        %v176 = vpop.permute.xlu0 %175
        %178 = vset.pattern.permute.xlu0 127
        %179 = vperm.xlu0 %178, %v170
        %v180 = vpop.permute.xlu0 %179
        %vm182 = vcmp.lt.s32.totalorder %v172, 127
        %183 = vrot.lane.b32.xlu0 %v170, 127
        %v184 = vpop.permute.xlu0 %183
        %v185 = vsel %vm182, %v184, %v180
        %vm186 = vcmp.ge.s32.totalorder %v172, 1
        %187 = vrot.lane.b32.xlu0 %v170, 1
        %v188 = vpop.permute.xlu0 %187
        %v189 = vsel %vm186, %v188, %v176
        %v190 = vadd.f32 %v170, %v185
        %v191 = vadd.f32 %v190, %v189
        %vm192 = vcmp.lt.s32.totalorder %v172, 126
        %193 = vrot.lane.b32.xlu0 %v170, 126
        %v194 = vpop.permute.xlu0 %193
        %v195 = vsel %vm192, %v194, %v180
        %vm196 = vcmp.ge.s32.totalorder %v172, 2
        %197 = vrot.lane.b32.xlu0 %v170, 2
        %v198 = vpop.permute.xlu0 %197
        %v199 = vsel %vm196, %v198, %v176
        %v200 = vadd.f32 %v191, %v195
        %v201 = vadd.f32 %v200, %v199
        %vm202 = vcmp.lt.s32.totalorder %v172, 125
        %203 = vrot.lane.b32.xlu0 %v170, 125
        %v204 = vpop.permute.xlu0 %203
        %v205 = vsel %vm202, %v204, %v180
        %vm206 = vcmp.ge.s32.totalorder %v172, 3
        %207 = vrot.lane.b32.xlu0 %v170, 3
        %v208 = vpop.permute.xlu0 %207
        %v209 = vsel %vm206, %v208, %v176
        %v210 = vadd.f32 %v201, %v205
        %v211 = vadd.f32 %v210, %v209
        %vm212 = vcmp.lt.s32.totalorder %v172, 124
        %213 = vrot.lane.b32.xlu0 %v170, 124
        %v214 = vpop.permute.xlu0 %213
        %v215 = vsel %vm212, %v214, %v180
        %vm216 = vcmp.ge.s32.totalorder %v172, 4
        %217 = vrot.lane.b32.xlu0 %v170, 4
        %v218 = vpop.permute.xlu0 %217
        %v219 = vsel %vm216, %v218, %v176
        %v220 = vadd.f32 %v211, %v215
        %v221 = vadd.f32 %v220, %v219
        %vm222 = vcmp.lt.s32.totalorder %v172, 123
        %223 = vrot.lane.b32.xlu0 %v170, 123
        %v224 = vpop.permute.xlu0 %223
        %v225 = vsel %vm222, %v224, %v180
        %vm226 = vcmp.ge.s32.totalorder %v172, 5
        %227 = vrot.lane.b32.xlu0 %v170, 5
        %v228 = vpop.permute.xlu0 %227
        %v229 = vsel %vm226, %v228, %v176
        %v230 = vadd.f32 %v221, %v225
        %v231 = vadd.f32 %v230, %v229
        %vm232 = vcmp.lt.s32.totalorder %v172, 122
        %233 = vrot.lane.b32.xlu0 %v170, 122
        %v234 = vpop.permute.xlu0 %233
        %v235 = vsel %vm232, %v234, %v180
        %vm236 = vcmp.ge.s32.totalorder %v172, 6
        %237 = vrot.lane.b32.xlu0 %v170, 6
        %v238 = vpop.permute.xlu0 %237
        %v239 = vsel %vm236, %v238, %v176
        %v240 = vadd.f32 %v231, %v235
        %v241 = vadd.f32 %v240, %v239
        %vm242 = vcmp.lt.s32.totalorder %v172, 121
        %243 = vrot.lane.b32.xlu0 %v170, 121
        %v244 = vpop.permute.xlu0 %243
        %v245 = vsel %vm242, %v244, %v180
        %vm246 = vcmp.ge.s32.totalorder %v172, 7
        %247 = vrot.lane.b32.xlu0 %v170, 7
        %v248 = vpop.permute.xlu0 %247
        %v249 = vsel %vm246, %v248, %v176
        %v250 = vadd.f32 %v241, %v245
        %v251 = vadd.f32 %v250, %v249
        %vm252 = vcmp.lt.s32.totalorder %v172, 120
        %253 = vrot.lane.b32.xlu0 %v170, 120
        %v254 = vpop.permute.xlu0 %253
        %v255 = vsel %vm252, %v254, %v180
        %vm256 = vcmp.ge.s32.totalorder %v172, 8
        %257 = vrot.lane.b32.xlu0 %v170, 8
        %v258 = vpop.permute.xlu0 %257
        %v259 = vsel %vm256, %v258, %v176
        %v260 = vadd.f32 %v251, %v255
        %v261 = vadd.f32 %v260, %v259
        %vm262 = vcmp.lt.s32.totalorder %v172, 119
        %263 = vrot.lane.b32.xlu0 %v170, 119
        %v264 = vpop.permute.xlu0 %263
        %v265 = vsel %vm262, %v264, %v180
        %vm266 = vcmp.ge.s32.totalorder %v172, 9
        %267 = vrot.lane.b32.xlu0 %v170, 9
        %v268 = vpop.permute.xlu0 %267
        %v269 = vsel %vm266, %v268, %v176
        %v270 = vadd.f32 %v261, %v265
        %v271 = vadd.f32 %v270, %v269
        %vm272 = vcmp.lt.s32.totalorder %v172, 118
        %273 = vrot.lane.b32.xlu0 %v170, 118
        %v274 = vpop.permute.xlu0 %273
        %v275 = vsel %vm272, %v274, %v180
        %vm276 = vcmp.ge.s32.totalorder %v172, 10
        %277 = vrot.lane.b32.xlu0 %v170, 10
        %v278 = vpop.permute.xlu0 %277
        %v279 = vsel %vm276, %v278, %v176
        %v280 = vadd.f32 %v271, %v275
        %v281 = vadd.f32 %v280, %v279
        %vm282 = vcmp.lt.s32.totalorder %v172, 117
        %283 = vrot.lane.b32.xlu0 %v170, 117
        %v284 = vpop.permute.xlu0 %283
        %v285 = vsel %vm282, %v284, %v180
        %vm286 = vcmp.ge.s32.totalorder %v172, 11
        %287 = vrot.lane.b32.xlu0 %v170, 11
        %v288 = vpop.permute.xlu0 %287
        %v289 = vsel %vm286, %v288, %v176
        %v290 = vadd.f32 %v281, %v285
        %v291 = vadd.f32 %v290, %v289
        %vm292 = vcmp.lt.s32.totalorder %v172, 116
        %293 = vrot.lane.b32.xlu0 %v170, 116
        %v294 = vpop.permute.xlu0 %293
        %v295 = vsel %vm292, %v294, %v180
        %vm296 = vcmp.ge.s32.totalorder %v172, 12
        %297 = vrot.lane.b32.xlu0 %v170, 12
        %v298 = vpop.permute.xlu0 %297
        %v299 = vsel %vm296, %v298, %v176
        %v300 = vadd.f32 %v291, %v295
        %v301 = vadd.f32 %v300, %v299
        %v302 = vmul.f32 %v301, 0.04
        %v303 = vsub.f32 %v170, %v302
        %304 = vst [vmem:[%s162] sm:$0xff] %v303
        %305 = vst [vmem:[%s169] sm:$0xff] %v302
        %s306 = sand.u32 %s57, 1
        %s307 = scalar_lea.sflag [#allocation4], %s306
        %s308 = sand.u32 %s57, 1
        %s309 = smul.addr %s308, 8
        %s310 = scalar_lea.vmem [#allocation5], %s309
        %s311 = sand.u32 %s83, 1
        %s312 = scalar_lea.sflag [#allocation7], %s311
        %s313 = sand.u32 %s83, 1
        %s314 = smul.addr %s313, 8
        %s315 = scalar_lea.vmem [#allocation6], %s314
        // Predicated region
        $region29: #{tpu_custom_call.1} parent=23 // pred_check
          %p316 = pneg %p67
        $region30: #{tpu_custom_call.1} parent=23 // pred_check_branch
          %318 = sbr.rel (%p316) target = $region32
        $region31: #{tpu_custom_call.1} parent=23 // pred_region
          %s320 = ssub.s32 128, 128
          %321 = vsyncadd %s307, %s320
          %s322 = smul.addr %s23, 128
          %s323 = scalar_lea.hbm %s1, %s322
          %s325 = sshll.u32 %s310, 4
          %s326 = int_to_ptr.vmem [resolvable:$true] %s325
          %328 = dma.vmem_to_hbm [thread:$0]  %s326, 128, %s323, %s307
        $region32: #{tpu_custom_call.1} parent=23 // pred_fallthru
          _
        // Predicated region
        $region33: #{tpu_custom_call.1} parent=23 // pred_check
          %p329 = pneg %p93
        $region34: #{tpu_custom_call.1} parent=23 // pred_check_branch
          %331 = sbr.rel (%p329) target = $region36
        $region35: #{tpu_custom_call.1} parent=23 // pred_region
          %s333 = ssub.s32 128, 128
          %334 = vsyncadd %s312, %s333
          %s335 = smul.addr %s23, 128
          %s336 = scalar_lea.hbm %s2, %s335
          %s338 = sshll.u32 %s315, 4
          %s339 = int_to_ptr.vmem [resolvable:$true] %s338
          %341 = dma.vmem_to_hbm [thread:$0]  %s339, 128, %s336, %s312
        $region36: #{tpu_custom_call.1} parent=23 // pred_fallthru
          _
      $region24: #{tpu_custom_call.1} parent=5 // pred_fallthru
        _
      %p342 = scmp.le.s32.totalorder 2, %s18
      // Predicated region
      $region37: #{tpu_custom_call.1} parent=5 // pred_check
        %p343 = pneg %p342
      $region38: #{tpu_custom_call.1} parent=5 // pred_check_branch
        %345 = sbr.rel (%p343) target = $region40
      $region39: #{tpu_custom_call.1} parent=5 // pred_region
        %s346 = ssub.s32 %s18, 2
        // Predicated region
        $region41: #{tpu_custom_call.1} parent=39 // pred_check
          %p347 = pneg %p73
        $region42: #{tpu_custom_call.1} parent=39 // pred_check_branch
          %349 = sbr.rel (%p347) target = $region44
        $region43: #{tpu_custom_call.1} parent=39 // pred_region
          %s350 = sand.u32 %s58, 1
          %s351 = scalar_lea.sflag [#allocation4], %s350
          %s352 = sand.u32 %s58, 1
          %s353 = smul.addr %s352, 8
          %s354 = scalar_lea.vmem [#allocation5], %s353
          %355 = dma.done %s351, 128
        $region44: #{tpu_custom_call.1} parent=39 // pred_fallthru
          _
        // Predicated region
        $region45: #{tpu_custom_call.1} parent=39 // pred_check
          %p356 = pneg %p99
        $region46: #{tpu_custom_call.1} parent=39 // pred_check_branch
          %358 = sbr.rel (%p356) target = $region48
        $region47: #{tpu_custom_call.1} parent=39 // pred_region
          %s359 = sand.u32 %s84, 1
          %s360 = scalar_lea.sflag [#allocation7], %s359
          %s361 = sand.u32 %s84, 1
          %s362 = smul.addr %s361, 8
          %s363 = scalar_lea.vmem [#allocation6], %s362
          %364 = dma.done %s360, 128
        $region48: #{tpu_custom_call.1} parent=39 // pred_fallthru
          _
      $region40: #{tpu_custom_call.1} parent=5 // pred_fallthru
        _
    $region6: #{tpu_custom_call.1} parent=1 // loop_footer
      %s22 = sadd.s32 1, %s18
    $region7: #{tpu_custom_call.1} parent=1 // loop_footer_branch
      %17 = sbr.rel target = $region3
    $region8: #{tpu_custom_call.1} parent=1 // loop_exit
      _
    %365 = vsyncpa [#allocation3], 1
    %s366 = scalar_lea.sflag [#allocation3], 1
    %367 = vsyncpa %s366, 1
    %368 = vsyncpa [#allocation4], 1
    %s369 = scalar_lea.sflag [#allocation4], 1
    %370 = vsyncpa %s369, 1
    %371 = vsyncpa [#allocation7], 1
    %s372 = scalar_lea.sflag [#allocation7], 1
    %373 = vsyncpa %s372, 1

</llo_original>
